<compile_context>
chip_gen: v6e
topology: v6e:2x2x1
jax: 0.10.0
libtpu: 0.0.40
codegen_flags: <defaults>
</compile_context>

<pallas_src>
import jax
import jax.numpy as jnp
from jax.experimental import pallas as pl
from jax.experimental.pallas import tpu as pltpu

EPS = 1e-5


def _round_up8(n):
    return -(-n // 8) * 8


def _weight_layout(config_dim, meta_dim, hidden_dim):
    """Shapes and row offsets of the six fused weight slabs inside wbuf."""
    h = hidden_dim
    dcat = meta_dim + config_dim
    shapes = [
        (dcat, 3 * h),     # L1: block-diag [fc1_m | fc1_c]
        (3 * h, 2 * h),    # L2: block-diag [fc2_m | fc2_c]
        (2 * h, h // 4),   # L3: block-diag [fc3_m | fc3_c] -> output == cat(meta, config)
        (h // 4, h),       # fc4
        (h, h // 4),       # fc5
        (h // 4, 1),       # fc6
    ]
    offs, r = [], 0
    for rows, _ in shapes:
        offs.append(r)
        r += _round_up8(rows)
    return shapes, offs, r, 3 * h   # shapes, row offsets, total rows, width


def make_network1_kernel(config_dim, meta_dim, hidden_dim):
    h = hidden_dim
    shapes, offs, _, _ = _weight_layout(config_dim, meta_dim, hidden_dim)

    def kernel(config_ref, meta_ref, w_ref, v_ref, o_ref):
        def bn_train(x, g, b):
            # training-mode BatchNorm1d as a single FMA: x*scale + shift
            mean = jnp.mean(x, axis=0, keepdims=True)
            var = jnp.mean(x * x, axis=0, keepdims=True) - mean * mean
            scale = g * jax.lax.rsqrt(var + EPS)
            return x * scale + (b - mean * scale)

        def lin(x, i):
            rows, cols = shapes[i]
            r0 = offs[i]
            return (jnp.dot(x, w_ref[r0:r0 + rows, 0:cols],
                            preferred_element_type=jnp.float32)
                    + v_ref[i:i + 1, 0:cols])

        # meta branch input is batch-normalized; config branch input is raw
        meta = bn_train(meta_ref[...],
                        v_ref[6:7, 0:meta_dim], v_ref[7:8, 0:meta_dim])
        x = jnp.concatenate([meta, config_ref[...]], axis=1)   # (B, Dm+Dc)

        # fused (block-diagonal) branch MLPs: 3 matmuls instead of 6;
        # layer-3 output is already [meta_out | config_out] == torch.cat(...)
        x = jnp.maximum(lin(x, 0), 0.0)    # (B, 3h)
        x = jnp.maximum(lin(x, 1), 0.0)    # (B, 2h)
        x = jnp.maximum(lin(x, 2), 0.0)    # (B, h//4)

        # bn_cat + head
        x = bn_train(x, v_ref[8:9, 0:h // 4], v_ref[9:10, 0:h // 4])
        x = jnp.maximum(lin(x, 3), 0.0)    # (B, h)
        x = jnp.maximum(lin(x, 4), 0.0)    # (B, h//4)
        o_ref[...] = lin(x, 5)             # (B, 1)

    return kernel


def init_params(key, config_dim, meta_dim, hidden_dim=32):
    h = hidden_dim
    dims = {
        "w1m": (meta_dim, 2 * h), "w2m": (2 * h, h), "w3m": (h, h // 8),
        "w1c": (config_dim, h), "w2c": (h, h), "w3c": (h, h // 8),
        "w4": (h // 4, h), "w5": (h, h // 4), "w6": (h // 4, 1),
    }
    params = {}
    keys = jax.random.split(key, len(dims))
    for k, (name, (din, dout)) in zip(keys, dims.items()):
        params[name] = (jax.random.normal(k, (din, dout), jnp.float32)
                        * (1.0 / jnp.sqrt(din)))
        params[name.replace("w", "b")] = jnp.zeros((1, dout), jnp.float32)
    # BatchNorm affine params (gamma=1, beta=0, PyTorch default init)
    params["bnm_g"] = jnp.ones((1, meta_dim), jnp.float32)
    params["bnm_b"] = jnp.zeros((1, meta_dim), jnp.float32)
    params["bnc_g"] = jnp.ones((1, h // 4), jnp.float32)
    params["bnc_b"] = jnp.zeros((1, h // 4), jnp.float32)
    return params


def pack_params(params, config_dim, meta_dim, hidden_dim=32):
    """Pack all weights/biases/BN params into two flat buffers (done once)."""
    h = hidden_dim
    shapes, offs, total_rows, width = _weight_layout(config_dim, meta_dim, h)

    # block-diagonal fusion of the two branches
    w1 = jnp.zeros(shapes[0], jnp.float32)
    w1 = w1.at[:meta_dim, :2 * h].set(params["w1m"])
    w1 = w1.at[meta_dim:, 2 * h:].set(params["w1c"])
    w2 = jnp.zeros(shapes[1], jnp.float32)
    w2 = w2.at[:2 * h, :h].set(params["w2m"])
    w2 = w2.at[2 * h:, h:].set(params["w2c"])
    w3 = jnp.zeros(shapes[2], jnp.float32)
    w3 = w3.at[:h, :h // 8].set(params["w3m"])
    w3 = w3.at[h:, h // 8:].set(params["w3c"])
    slabs = [w1, w2, w3, params["w4"], params["w5"], params["w6"]]

    wbuf = jnp.zeros((total_rows, width), jnp.float32)
    for off, w in zip(offs, slabs):
        wbuf = wbuf.at[off:off + w.shape[0], :w.shape[1]].set(w)

    b1 = jnp.concatenate([params["b1m"], params["b1c"]], axis=1)
    b2 = jnp.concatenate([params["b2m"], params["b2c"]], axis=1)
    b3 = jnp.concatenate([params["b3m"], params["b3c"]], axis=1)
    vecs = [b1, b2, b3, params["b4"], params["b5"], params["b6"],
            params["bnm_g"], params["bnm_b"], params["bnc_g"], params["bnc_b"]]
    vbuf = jnp.zeros((len(vecs), width), jnp.float32)
    for i, v in enumerate(vecs):
        vbuf = vbuf.at[i, :v.shape[1]].set(v[0])
    return wbuf, vbuf


def network1_forward(config, meta, wbuf, vbuf, config_dim, meta_dim,
                     hidden_dim=32):
    B = config.shape[0]
    kernel = make_network1_kernel(config_dim, meta_dim, hidden_dim)
    vmem = pl.BlockSpec(memory_space=pltpu.MemorySpace.VMEM)
    return pl.pallas_call(
        kernel,
        out_shape=jax.ShapeDtypeStruct((B, 1), jnp.float32),
        in_specs=[vmem, vmem, vmem, vmem],
        out_specs=vmem,
    )(config, meta, wbuf, vbuf)


def network1_reference(config, meta, p):
    def bn(x, g, b):
        mean = jnp.mean(x, axis=0, keepdims=True)
        var = jnp.mean((x - mean) ** 2, axis=0, keepdims=True)
        return g * (x - mean) / jnp.sqrt(var + EPS) + b

    def lr(x, w, b):
        return jnp.maximum(x @ w + b, 0.0)

    m = bn(meta, p["bnm_g"], p["bnm_b"])
    m = lr(m, p["w1m"], p["b1m"])
    m = lr(m, p["w2m"], p["b2m"])
    m = lr(m, p["w3m"], p["b3m"])
    c = lr(config, p["w1c"], p["b1c"])
    c = lr(c, p["w2c"], p["b2c"])
    c = lr(c, p["w3c"], p["b3c"])
    x = jnp.concatenate([m, c], axis=1)
    x = bn(x, p["bnc_g"], p["bnc_b"])
    x = lr(x, p["w4"], p["b4"])
    x = lr(x, p["w5"], p["b5"])
    return x @ p["w6"] + p["b6"]


if __name__ == "__main__":
    key = jax.random.PRNGKey(0)
    B, config_dim, meta_dim, hidden_dim = 8, 16, 12, 32

    k_cfg, k_meta, k_param = jax.random.split(key, 3)
    config = jax.random.normal(k_cfg, (B, config_dim), jnp.float32)
    meta = jax.random.normal(k_meta, (B, meta_dim), jnp.float32)
    params = init_params(k_param, config_dim, meta_dim, hidden_dim)

    # one-time parameter packing (2 buffers -> 4 total DMAs per forward call)
    wbuf, vbuf = pack_params(params, config_dim, meta_dim, hidden_dim)
    wbuf, vbuf = jax.block_until_ready((wbuf, vbuf))

    out = network1_forward(config, meta, wbuf, vbuf,
                           config_dim, meta_dim, hidden_dim)
    jax.block_until_ready(out)

    ref = network1_reference(config, meta, params)
    assert out.shape == (B, 1)
    assert jnp.allclose(out, ref, atol=1e-3, rtol=1e-3), "mismatch vs reference"

    print("KERNEL_OK")
</pallas_src>

<mosaic_0001>
module attributes {stable_mosaic.version = 11 : i64} {
  func.func @kernel(%arg0: memref<8x16xf32, #tpu.memory_space<vmem>>, %arg1: memref<8x12xf32, #tpu.memory_space<vmem>>, %arg2: memref<240x96xf32, #tpu.memory_space<vmem>>, %arg3: memref<10x96xf32, #tpu.memory_space<vmem>>, %arg4: memref<8x1xf32, #tpu.memory_space<vmem>>) attributes {dimension_semantics = [], scalar_prefetch = 0 : i64, scratch_operands = 0 : i64, tpu.core_type = #tpu.core_type<tc>} {
    %c0 = arith.constant 0 : index
    %c0_0 = arith.constant 0 : index
    %0 = vector.load %arg1[%c0, %c0_0] : memref<8x12xf32, #tpu.memory_space<vmem>>, vector<8x12xf32>
    %c6 = arith.constant 6 : index
    %c0_1 = arith.constant 0 : index
    %1 = vector.load %arg3[%c6, %c0_1] : memref<10x96xf32, #tpu.memory_space<vmem>>, vector<1x12xf32>
    %c7 = arith.constant 7 : index
    %c0_2 = arith.constant 0 : index
    %2 = vector.load %arg3[%c7, %c0_2] : memref<10x96xf32, #tpu.memory_space<vmem>>, vector<1x12xf32>
    %cst = arith.constant dense<0.000000e+00> : vector<12xf32>
    %3 = vector.multi_reduction <add>, %0, %cst [0] : vector<8x12xf32> to vector<12xf32>
    %4 = vector.shape_cast %3 : vector<12xf32> to vector<1x12xf32>
    %cst_3 = arith.constant 8.000000e+00 : f32
    %5 = vector.broadcast %cst_3 : f32 to vector<1x12xf32>
    %6 = arith.divf %4, %5 : vector<1x12xf32>
    %7 = arith.mulf %0, %0 : vector<8x12xf32>
    %cst_4 = arith.constant dense<0.000000e+00> : vector<12xf32>
    %8 = vector.multi_reduction <add>, %7, %cst_4 [0] : vector<8x12xf32> to vector<12xf32>
    %9 = vector.shape_cast %8 : vector<12xf32> to vector<1x12xf32>
    %cst_5 = arith.constant 8.000000e+00 : f32
    %10 = vector.broadcast %cst_5 : f32 to vector<1x12xf32>
    %11 = arith.divf %9, %10 : vector<1x12xf32>
    %12 = arith.mulf %6, %6 : vector<1x12xf32>
    %13 = arith.subf %11, %12 : vector<1x12xf32>
    %cst_6 = arith.constant 9.99999974E-6 : f32
    %14 = vector.broadcast %cst_6 : f32 to vector<1x12xf32>
    %15 = arith.addf %13, %14 : vector<1x12xf32>
    %16 = math.rsqrt %15 : vector<1x12xf32>
    %17 = arith.mulf %1, %16 : vector<1x12xf32>
    %18 = vector.broadcast %17 : vector<1x12xf32> to vector<8x12xf32>
    %19 = arith.mulf %0, %18 : vector<8x12xf32>
    %20 = arith.mulf %6, %17 : vector<1x12xf32>
    %21 = arith.subf %2, %20 : vector<1x12xf32>
    %22 = vector.broadcast %21 : vector<1x12xf32> to vector<8x12xf32>
    %23 = arith.addf %19, %22 : vector<8x12xf32>
    %c0_7 = arith.constant 0 : index
    %c0_8 = arith.constant 0 : index
    %24 = vector.load %arg0[%c0_7, %c0_8] : memref<8x16xf32, #tpu.memory_space<vmem>>, vector<8x16xf32>
    %25 = tpu.concatenate %23, %24 in 1 : vector<8x12xf32>, vector<8x16xf32> -> vector<8x28xf32>
    %c0_9 = arith.constant 0 : index
    %c0_10 = arith.constant 0 : index
    %26 = vector.load %arg2[%c0_9, %c0_10] : memref<240x96xf32, #tpu.memory_space<vmem>>, vector<28x96xf32>
    %cst_11 = arith.constant dense<0.000000e+00> : vector<8x96xf32>
    %27 = tpu.matmul %25, %26, %cst_11 {dimension_numbers = #tpu.dot_dimension_numbers<[1], [0], [0], [1], [0, 0, 1, 1], [], []>} : vector<8x28xf32>, vector<28x96xf32>, vector<8x96xf32> -> vector<8x96xf32>
    %c0_12 = arith.constant 0 : index
    %c0_13 = arith.constant 0 : index
    %28 = vector.load %arg3[%c0_12, %c0_13] : memref<10x96xf32, #tpu.memory_space<vmem>>, vector<1x96xf32>
    %29 = vector.broadcast %28 : vector<1x96xf32> to vector<8x96xf32>
    %30 = arith.addf %27, %29 : vector<8x96xf32>
    %cst_14 = arith.constant 0.000000e+00 : f32
    %31 = vector.broadcast %cst_14 : f32 to vector<8x96xf32>
    %32 = arith.maximumf %30, %31 : vector<8x96xf32>
    %c32 = arith.constant 32 : index
    %c0_15 = arith.constant 0 : index
    %33 = vector.load %arg2[%c32, %c0_15] : memref<240x96xf32, #tpu.memory_space<vmem>>, vector<96x64xf32>
    %cst_16 = arith.constant dense<0.000000e+00> : vector<8x64xf32>
    %34 = tpu.matmul %32, %33, %cst_16 {dimension_numbers = #tpu.dot_dimension_numbers<[1], [0], [0], [1], [0, 0, 1, 1], [], []>} : vector<8x96xf32>, vector<96x64xf32>, vector<8x64xf32> -> vector<8x64xf32>
    %c1 = arith.constant 1 : index
    %c0_17 = arith.constant 0 : index
    %35 = vector.load %arg3[%c1, %c0_17] : memref<10x96xf32, #tpu.memory_space<vmem>>, vector<1x64xf32>
    %36 = vector.broadcast %35 : vector<1x64xf32> to vector<8x64xf32>
    %37 = arith.addf %34, %36 : vector<8x64xf32>
    %cst_18 = arith.constant 0.000000e+00 : f32
    %38 = vector.broadcast %cst_18 : f32 to vector<8x64xf32>
    %39 = arith.maximumf %37, %38 : vector<8x64xf32>
    %c128 = arith.constant 128 : index
    %c0_19 = arith.constant 0 : index
    %40 = vector.load %arg2[%c128, %c0_19] : memref<240x96xf32, #tpu.memory_space<vmem>>, vector<64x8xf32>
    %cst_20 = arith.constant dense<0.000000e+00> : vector<8x8xf32>
    %41 = tpu.matmul %39, %40, %cst_20 {dimension_numbers = #tpu.dot_dimension_numbers<[1], [0], [0], [1], [0, 0, 1, 1], [], []>} : vector<8x64xf32>, vector<64x8xf32>, vector<8x8xf32> -> vector<8x8xf32>
    %c2 = arith.constant 2 : index
    %c0_21 = arith.constant 0 : index
    %42 = vector.load %arg3[%c2, %c0_21] : memref<10x96xf32, #tpu.memory_space<vmem>>, vector<1x8xf32>
    %43 = vector.broadcast %42 : vector<1x8xf32> to vector<8x8xf32>
    %44 = arith.addf %41, %43 : vector<8x8xf32>
    %cst_22 = arith.constant 0.000000e+00 : f32
    %45 = vector.broadcast %cst_22 : f32 to vector<8x8xf32>
    %46 = arith.maximumf %44, %45 : vector<8x8xf32>
    %c8 = arith.constant 8 : index
    %c0_23 = arith.constant 0 : index
    %47 = vector.load %arg3[%c8, %c0_23] : memref<10x96xf32, #tpu.memory_space<vmem>>, vector<1x8xf32>
    %c9 = arith.constant 9 : index
    %c0_24 = arith.constant 0 : index
    %48 = vector.load %arg3[%c9, %c0_24] : memref<10x96xf32, #tpu.memory_space<vmem>>, vector<1x8xf32>
    %cst_25 = arith.constant dense<0.000000e+00> : vector<8xf32>
    %49 = vector.multi_reduction <add>, %46, %cst_25 [0] : vector<8x8xf32> to vector<8xf32>
    %50 = vector.shape_cast %49 : vector<8xf32> to vector<1x8xf32>
    %cst_26 = arith.constant 8.000000e+00 : f32
    %51 = vector.broadcast %cst_26 : f32 to vector<1x8xf32>
    %52 = arith.divf %50, %51 : vector<1x8xf32>
    %53 = arith.mulf %46, %46 : vector<8x8xf32>
    %cst_27 = arith.constant dense<0.000000e+00> : vector<8xf32>
    %54 = vector.multi_reduction <add>, %53, %cst_27 [0] : vector<8x8xf32> to vector<8xf32>
    %55 = vector.shape_cast %54 : vector<8xf32> to vector<1x8xf32>
    %cst_28 = arith.constant 8.000000e+00 : f32
    %56 = vector.broadcast %cst_28 : f32 to vector<1x8xf32>
    %57 = arith.divf %55, %56 : vector<1x8xf32>
    %58 = arith.mulf %52, %52 : vector<1x8xf32>
    %59 = arith.subf %57, %58 : vector<1x8xf32>
    %cst_29 = arith.constant 9.99999974E-6 : f32
    %60 = vector.broadcast %cst_29 : f32 to vector<1x8xf32>
    %61 = arith.addf %59, %60 : vector<1x8xf32>
    %62 = math.rsqrt %61 : vector<1x8xf32>
    %63 = arith.mulf %47, %62 : vector<1x8xf32>
    %64 = vector.broadcast %63 : vector<1x8xf32> to vector<8x8xf32>
    %65 = arith.mulf %46, %64 : vector<8x8xf32>
    %66 = arith.mulf %52, %63 : vector<1x8xf32>
    %67 = arith.subf %48, %66 : vector<1x8xf32>
    %68 = vector.broadcast %67 : vector<1x8xf32> to vector<8x8xf32>
    %69 = arith.addf %65, %68 : vector<8x8xf32>
    %c192 = arith.constant 192 : index
    %c0_30 = arith.constant 0 : index
    %70 = vector.load %arg2[%c192, %c0_30] : memref<240x96xf32, #tpu.memory_space<vmem>>, vector<8x32xf32>
    %cst_31 = arith.constant dense<0.000000e+00> : vector<8x32xf32>
    %71 = tpu.matmul %69, %70, %cst_31 {dimension_numbers = #tpu.dot_dimension_numbers<[1], [0], [0], [1], [0, 0, 1, 1], [], []>} : vector<8x8xf32>, vector<8x32xf32>, vector<8x32xf32> -> vector<8x32xf32>
    %c3 = arith.constant 3 : index
    %c0_32 = arith.constant 0 : index
    %72 = vector.load %arg3[%c3, %c0_32] : memref<10x96xf32, #tpu.memory_space<vmem>>, vector<1x32xf32>
    %73 = vector.broadcast %72 : vector<1x32xf32> to vector<8x32xf32>
    %74 = arith.addf %71, %73 : vector<8x32xf32>
    %cst_33 = arith.constant 0.000000e+00 : f32
    %75 = vector.broadcast %cst_33 : f32 to vector<8x32xf32>
    %76 = arith.maximumf %74, %75 : vector<8x32xf32>
    %c200 = arith.constant 200 : index
    %c0_34 = arith.constant 0 : index
    %77 = vector.load %arg2[%c200, %c0_34] : memref<240x96xf32, #tpu.memory_space<vmem>>, vector<32x8xf32>
    %cst_35 = arith.constant dense<0.000000e+00> : vector<8x8xf32>
    %78 = tpu.matmul %76, %77, %cst_35 {dimension_numbers = #tpu.dot_dimension_numbers<[1], [0], [0], [1], [0, 0, 1, 1], [], []>} : vector<8x32xf32>, vector<32x8xf32>, vector<8x8xf32> -> vector<8x8xf32>
    %c4 = arith.constant 4 : index
    %c0_36 = arith.constant 0 : index
    %79 = vector.load %arg3[%c4, %c0_36] : memref<10x96xf32, #tpu.memory_space<vmem>>, vector<1x8xf32>
    %80 = vector.broadcast %79 : vector<1x8xf32> to vector<8x8xf32>
    %81 = arith.addf %78, %80 : vector<8x8xf32>
    %cst_37 = arith.constant 0.000000e+00 : f32
    %82 = vector.broadcast %cst_37 : f32 to vector<8x8xf32>
    %83 = arith.maximumf %81, %82 : vector<8x8xf32>
    %c232 = arith.constant 232 : index
    %c0_38 = arith.constant 0 : index
    %84 = vector.load %arg2[%c232, %c0_38] : memref<240x96xf32, #tpu.memory_space<vmem>>, vector<8x1xf32>
    %cst_39 = arith.constant dense<0.000000e+00> : vector<8x1xf32>
    %85 = tpu.matmul %83, %84, %cst_39 {dimension_numbers = #tpu.dot_dimension_numbers<[1], [0], [0], [1], [0, 0, 1, 1], [], []>} : vector<8x8xf32>, vector<8x1xf32>, vector<8x1xf32> -> vector<8x1xf32>
    %c5 = arith.constant 5 : index
    %c0_40 = arith.constant 0 : index
    %86 = vector.load %arg3[%c5, %c0_40] : memref<10x96xf32, #tpu.memory_space<vmem>>, vector<1x1xf32>
    %87 = vector.broadcast %86 : vector<1x1xf32> to vector<8x1xf32>
    %88 = arith.addf %85, %87 : vector<8x1xf32>
    %c0_41 = arith.constant 0 : index
    %c0_42 = arith.constant 0 : index
    %89 = vector.load %arg4[%c0_41, %c0_42] : memref<8x1xf32, #tpu.memory_space<vmem>>, vector<8x1xf32>
    tpu.vector_store %arg4[%c0_41, %c0_42], %88 {strides = array<i32>} : memref<8x1xf32, #tpu.memory_space<vmem>>, vector<8x1xf32>,
    return
  }
}

</mosaic_0001>

<llo_original>
// kernel: tpu_custom_call.1
$region0: #{tpu_custom_call.1}
  #allocation0 [shape = 'u32[]', space=smem, size = 0x4, offset = 0x4, fixed_abs, tag = 'smem constant byte address 0x4 - core index']
  #allocation1 [shape = 'u32[144,128]{1,0:T(1,128)}', space=vmem, size = 0x12000, scoped, tag = 'internal scratch']
  %s0 = inlined_call_operand.vmem [shape: f32[8,16], index: 0, kind: input, shape index: {}]
  %s1 = inlined_call_operand.vmem [shape: f32[8,12], index: 1, kind: input, shape index: {}]
  %s2 = inlined_call_operand.vmem [shape: f32[240,96], index: 2, kind: input, shape index: {}]
  %s3 = inlined_call_operand.vmem [shape: f32[10,96], index: 3, kind: input, shape index: {}]
  %s4 = inlined_call_operand.vmem [shape: f32[8,1], index: 4, kind: output, shape index: {}]
  %s5 = sld [smem:[#allocation0]]
  $region26: #{tpu_custom_call.1} parent=0
    _
  %s7 = ssub.s32 1, %s5
  %s8 = scalar_select 0, %s7, %s5
  // Predicated region
  $region2: #{tpu_custom_call.1} parent=0 // pred_check
    _
  $region3: #{tpu_custom_call.1} parent=0 // pred_check_branch
    %10 = sbr.rel (0) target = $region5
  $region4: #{tpu_custom_call.1} parent=0 // pred_region
    _
  $region5: #{tpu_custom_call.1} parent=0 // pred_fallthru
    _
  // Predicated region
  $region6: #{tpu_custom_call.1} parent=0 // pred_check
    _
  $region7: #{tpu_custom_call.1} parent=0 // pred_check_branch
    %12 = sbr.rel (0) target = $region9
  $region8: #{tpu_custom_call.1} parent=0 // pred_region
    _
  $region9: #{tpu_custom_call.1} parent=0 // pred_fallthru
    _
  // Predicated region
  $region10: #{tpu_custom_call.1} parent=0 // pred_check
    _
  $region11: #{tpu_custom_call.1} parent=0 // pred_check_branch
    %14 = sbr.rel (0) target = $region13
  $region12: #{tpu_custom_call.1} parent=0 // pred_region
    _
  $region13: #{tpu_custom_call.1} parent=0 // pred_fallthru
    _
  // Predicated region
  $region14: #{tpu_custom_call.1} parent=0 // pred_check
    _
  $region15: #{tpu_custom_call.1} parent=0 // pred_check_branch
    %16 = sbr.rel (0) target = $region17
  $region16: #{tpu_custom_call.1} parent=0 // pred_region
    _
  $region17: #{tpu_custom_call.1} parent=0 // pred_fallthru
    _
  %v17 = vld [vmem:[%s1] sm:$0xff]
  %v18 = vld [vmem:[%s3 + $0x6] sm:$0x1]
  %v19 = vld [vmem:[%s3 + $0x7] sm:$0x1]
  %vm20 = vcmask 97280
  %v21 = vsel %vm20, %v17, 0.0
  %v22 = vrot.slane %v21, 4
  %v23 = vadd.f32 %v21, %v22
  %v24 = vrot.slane %v23, 2
  %v25 = vadd.f32 %v23, %v24
  %v26 = vrot.slane %v25, 1
  %v27 = vadd.f32 %v25, %v26
  %v28 = vrcp.pop 8.0
  %v29 = vmul.f32 %v27, %v28
  %v30 = vmul.f32 %v17, %v17
  %v31 = vsel %vm20, %v30, 0.0
  %v32 = vrot.slane %v31, 4
  %v33 = vadd.f32 %v31, %v32
  %v34 = vrot.slane %v33, 2
  %v35 = vadd.f32 %v33, %v34
  %v36 = vrot.slane %v35, 1
  %v37 = vadd.f32 %v35, %v36
  %v38 = vmul.f32 %v37, %v28
  %v39 = vmul.f32 %v29, %v29
  %v40 = vsub.f32 %v38, %v39
  %v41 = vadd.f32 %v40, 1e-05
  %v42 = vrsqrt.pop %v41
  %v43 = vmul.f32 %v18, %v42
  %v44 = vlaneseq
  %v45 = vshrl.u32 %v44, 7
  %v46 = vsub.s32 0, %v45
  %v47 = vrot.slane %v43, %v46
  %v48 = vmul.f32 %v17, %v47
  %v49 = vmul.f32 %v29, %v43
  %v50 = vsub.f32 %v19, %v49
  %v51 = vlaneseq
  %v52 = vshrl.u32 %v51, 7
  %v53 = vsub.s32 0, %v52
  %v54 = vrot.slane %v50, %v53
  %v55 = vadd.f32 %v48, %v54
  %v56 = vld [vmem:[%s0] sm:$0xff]
  %58 = vrot.lane.b32.xlu0 %v56, 12
  %v59 = vpop.permute.xlu0 %58
  %v61 = vsel %vm20, %v55, %v59
  %v62 = vld [vmem:[%s2] sm:$0xff]
  %v63 = vld [vmem:[%s2 + $0x8] sm:$0xff]
  %v64 = vld [vmem:[%s2 + $0x10] sm:$0xff]
  %v65 = vld [vmem:[%s2 + $0x18] sm:$0xf]
  %v66 = vld [vmem:[%s3] sm:$0x1]
  %v67 = vlaneseq
  %v68 = vshrl.u32 %v67, 7
  %v69 = vsub.s32 0, %v68
  %v70 = vrot.slane %v66, %v69
  %vm71 = vcmask 228352
  %v73 = vsel %vm71, %v61, 0
  %vm75 = vcmask 1043456
  %v77 = vsel %vm75, %v65, 0
  %79 = vmatprep.subr.mxu0 0.0
  %80 = vmatpush1.msra.mxu0 0.0
  %81 = vmatprep.subr.mxu0 0.0
  %82 = vmatpush1.msra.mxu0 0.0
  %83 = vmatprep.subr.mxu0 0.0
  %84 = vmatpush1.msra.mxu0 0.0
  %85 = vmatprep.subr.mxu0 0.0
  %86 = vmatpush1.msra.mxu0 0.0
  %87 = vmatprep.subr.mxu0 0.0
  %88 = vmatpush1.msra.mxu0 0.0
  %89 = vmatprep.subr.mxu0 0.0
  %90 = vmatpush1.msra.mxu0 0.0
  %91 = vmatprep.subr.mxu0 0.0
  %92 = vmatpush1.msra.mxu0 0.0
  %93 = vmatprep.subr.mxu0 0.0
  %94 = vmatpush1.msra.mxu0 0.0
  %95 = vmatprep.subr.mxu0 0.0
  %96 = vmatpush1.msra.mxu0 0.0
  %97 = vmatprep.subr.mxu0 0.0
  %98 = vmatpush1.msra.mxu0 0.0
  %99 = vmatprep.subr.mxu0 0.0
  %100 = vmatpush1.msra.mxu0 0.0
  %101 = vmatprep.subr.mxu0 0.0
  %102 = vmatpush1.msra.mxu0 0.0
  %103 = vmatprep.subr.mxu0 0.0
  %104 = vmatpush1.msra.mxu0 %v77
  %105 = vmatprep.subr.mxu0 0.0
  %106 = vmatpush1.msra.mxu0 %v64
  %107 = vmatprep.subr.mxu0 0.0
  %108 = vmatpush1.msra.mxu0 %v63
  %109 = vmatprep.subr.mxu0 0.0
  %110 = vmatpush1.msra.mxu0 %v62
  %111 = vmatprep.subr.mxu0 0.0
  %112 = vmatpush2.msra.mxu0 0.0
  %113 = vmatprep.subr.mxu0 0.0
  %114 = vmatpush2.msra.mxu0 0.0
  %115 = vmatprep.subr.mxu0 0.0
  %116 = vmatpush2.msra.mxu0 0.0
  %117 = vmatprep.subr.mxu0 0.0
  %118 = vmatpush2.msra.mxu0 0.0
  %119 = vmatprep.subr.mxu0 0.0
  %120 = vmatpush2.msra.mxu0 0.0
  %121 = vmatprep.subr.mxu0 0.0
  %122 = vmatpush2.msra.mxu0 0.0
  %123 = vmatprep.subr.mxu0 0.0
  %124 = vmatpush2.msra.mxu0 0.0
  %125 = vmatprep.subr.mxu0 0.0
  %126 = vmatpush2.msra.mxu0 0.0
  %127 = vmatprep.subr.mxu0 0.0
  %128 = vmatpush2.msra.mxu0 0.0
  %129 = vmatprep.subr.mxu0 0.0
  %130 = vmatpush2.msra.mxu0 0.0
  %131 = vmatprep.subr.mxu0 0.0
  %132 = vmatpush2.msra.mxu0 0.0
  %133 = vmatprep.subr.mxu0 0.0
  %134 = vmatpush2.msra.mxu0 0.0
  %135 = vmatprep.subr.mxu0 0.0
  %136 = vmatpush2.msra.mxu0 0.0
  %137 = vmatprep.subr.mxu0 0.0
  %138 = vmatpush2.msra.mxu0 0.0
  %139 = vmatprep.subr.mxu0 0.0
  %140 = vmatpush2.msra.mxu0 0.0
  %141 = vmatprep.subr.mxu0 0.0
  %142 = vmatpush2.msra.mxu0 0.0
  %143 = vmatprep.mubr.f32.mxu0 0.0
  %144 = vmatmul.mubr.f32.gmra.mxu0 %v73
  %v145 = vpop.f32.mrf.mxu0
  %v146 = vadd.f32 %v70, %v145
  %v147 = vpop.f32.mrf.mxu0
  %148 = vdwg.mxu0
  %v149 = vmax.f32 %v146, 0.0
  %v150 = vld [vmem:[%s2 + $0x20] sm:$0xff]
  %v151 = vld [vmem:[%s2 + $0x28] sm:$0xff]
  %v152 = vld [vmem:[%s2 + $0x30] sm:$0xff]
  %v153 = vld [vmem:[%s2 + $0x38] sm:$0xff]
  %v154 = vld [vmem:[%s2 + $0x40] sm:$0xff]
  %v155 = vld [vmem:[%s2 + $0x48] sm:$0xff]
  %v156 = vld [vmem:[%s2 + $0x50] sm:$0xff]
  %v157 = vld [vmem:[%s2 + $0x58] sm:$0xff]
  %v158 = vld [vmem:[%s2 + $0x60] sm:$0xff]
  %v159 = vld [vmem:[%s2 + $0x68] sm:$0xff]
  %v160 = vld [vmem:[%s2 + $0x70] sm:$0xff]
  %v161 = vld [vmem:[%s2 + $0x78] sm:$0xff]
  %v162 = vld [vmem:[%s3 + $0x1] sm:$0x1]
  %v163 = vlaneseq
  %v164 = vshrl.u32 %v163, 7
  %v165 = vsub.s32 0, %v164
  %v166 = vrot.slane %v162, %v165
  %vm167 = vcmask 785408
  %v169 = vsel %vm167, %v149, 0
  %171 = vmatprep.subr.mxu0 0.0
  %172 = vmatpush1.msra.mxu0 0.0
  %173 = vmatprep.subr.mxu0 0.0
  %174 = vmatpush1.msra.mxu0 0.0
  %175 = vmatprep.subr.mxu0 0.0
  %176 = vmatpush1.msra.mxu0 0.0
  %177 = vmatprep.subr.mxu0 0.0
  %178 = vmatpush1.msra.mxu0 0.0
  %179 = vmatprep.subr.mxu0 0.0
  %180 = vmatpush1.msra.mxu0 %v161
  %181 = vmatprep.subr.mxu0 0.0
  %182 = vmatpush1.msra.mxu0 %v160
  %183 = vmatprep.subr.mxu0 0.0
  %184 = vmatpush1.msra.mxu0 %v159
  %185 = vmatprep.subr.mxu0 0.0
  %186 = vmatpush1.msra.mxu0 %v158
  %187 = vmatprep.subr.mxu0 0.0
  %188 = vmatpush1.msra.mxu0 %v157
  %189 = vmatprep.subr.mxu0 0.0
  %190 = vmatpush1.msra.mxu0 %v156
  %191 = vmatprep.subr.mxu0 0.0
  %192 = vmatpush1.msra.mxu0 %v155
  %193 = vmatprep.subr.mxu0 0.0
  %194 = vmatpush1.msra.mxu0 %v154
  %195 = vmatprep.subr.mxu0 0.0
  %196 = vmatpush1.msra.mxu0 %v153
  %197 = vmatprep.subr.mxu0 0.0
  %198 = vmatpush1.msra.mxu0 %v152
  %199 = vmatprep.subr.mxu0 0.0
  %200 = vmatpush1.msra.mxu0 %v151
  %201 = vmatprep.subr.mxu0 0.0
  %202 = vmatpush1.msra.mxu0 %v150
  %203 = vmatprep.subr.mxu0 0.0
  %204 = vmatpush2.msra.mxu0 0.0
  %205 = vmatprep.subr.mxu0 0.0
  %206 = vmatpush2.msra.mxu0 0.0
  %207 = vmatprep.subr.mxu0 0.0
  %208 = vmatpush2.msra.mxu0 0.0
  %209 = vmatprep.subr.mxu0 0.0
  %210 = vmatpush2.msra.mxu0 0.0
  %211 = vmatprep.subr.mxu0 0.0
  %212 = vmatpush2.msra.mxu0 0.0
  %213 = vmatprep.subr.mxu0 0.0
  %214 = vmatpush2.msra.mxu0 0.0
  %215 = vmatprep.subr.mxu0 0.0
  %216 = vmatpush2.msra.mxu0 0.0
  %217 = vmatprep.subr.mxu0 0.0
  %218 = vmatpush2.msra.mxu0 0.0
  %219 = vmatprep.subr.mxu0 0.0
  %220 = vmatpush2.msra.mxu0 0.0
  %221 = vmatprep.subr.mxu0 0.0
  %222 = vmatpush2.msra.mxu0 0.0
  %223 = vmatprep.subr.mxu0 0.0
  %224 = vmatpush2.msra.mxu0 0.0
  %225 = vmatprep.subr.mxu0 0.0
  %226 = vmatpush2.msra.mxu0 0.0
  %227 = vmatprep.subr.mxu0 0.0
  %228 = vmatpush2.msra.mxu0 0.0
  %229 = vmatprep.subr.mxu0 0.0
  %230 = vmatpush2.msra.mxu0 0.0
  %231 = vmatprep.subr.mxu0 0.0
  %232 = vmatpush2.msra.mxu0 0.0
  %233 = vmatprep.subr.mxu0 0.0
  %234 = vmatpush2.msra.mxu0 0.0
  %235 = vmatprep.mubr.f32.mxu0 0.0
  %236 = vmatmul.mubr.f32.gmra.mxu0 %v169
  %v237 = vpop.f32.mrf.mxu0
  %v238 = vadd.f32 %v166, %v237
  %v239 = vpop.f32.mrf.mxu0
  %240 = vdwg.mxu0
  %v241 = vmax.f32 %v238, 0.0
  %v242 = vld [vmem:[%s2 + $0x80] sm:$0xff]
  %v243 = vld [vmem:[%s2 + $0x88] sm:$0xff]
  %v244 = vld [vmem:[%s2 + $0x90] sm:$0xff]
  %v245 = vld [vmem:[%s2 + $0x98] sm:$0xff]
  %v246 = vld [vmem:[%s2 + $0xa0] sm:$0xff]
  %v247 = vld [vmem:[%s2 + $0xa8] sm:$0xff]
  %v248 = vld [vmem:[%s2 + $0xb0] sm:$0xff]
  %v249 = vld [vmem:[%s2 + $0xb8] sm:$0xff]
  %v250 = vld [vmem:[%s3 + $0x2] sm:$0x1]
  %v251 = vlaneseq
  %v252 = vshrl.u32 %v251, 7
  %v253 = vsub.s32 0, %v252
  %v254 = vrot.slane %v250, %v253
  %vm255 = vcmask 523264
  %v257 = vsel %vm255, %v241, 0
  %259 = vmatprep.subr.mxu0 0.0
  %260 = vmatpush1.msra.mxu0 0.0
  %261 = vmatprep.subr.mxu0 0.0
  %262 = vmatpush1.msra.mxu0 0.0
  %263 = vmatprep.subr.mxu0 0.0
  %264 = vmatpush1.msra.mxu0 0.0
  %265 = vmatprep.subr.mxu0 0.0
  %266 = vmatpush1.msra.mxu0 0.0
  %267 = vmatprep.subr.mxu0 0.0
  %268 = vmatpush1.msra.mxu0 0.0
  %269 = vmatprep.subr.mxu0 0.0
  %270 = vmatpush1.msra.mxu0 0.0
  %271 = vmatprep.subr.mxu0 0.0
  %272 = vmatpush1.msra.mxu0 0.0
  %273 = vmatprep.subr.mxu0 0.0
  %274 = vmatpush1.msra.mxu0 0.0
  %275 = vmatprep.subr.mxu0 0.0
  %276 = vmatpush1.msra.mxu0 %v249
  %277 = vmatprep.subr.mxu0 0.0
  %278 = vmatpush1.msra.mxu0 %v248
  %279 = vmatprep.subr.mxu0 0.0
  %280 = vmatpush1.msra.mxu0 %v247
  %281 = vmatprep.subr.mxu0 0.0
  %282 = vmatpush1.msra.mxu0 %v246
  %283 = vmatprep.subr.mxu0 0.0
  %284 = vmatpush1.msra.mxu0 %v245
  %285 = vmatprep.subr.mxu0 0.0
  %286 = vmatpush1.msra.mxu0 %v244
  %287 = vmatprep.subr.mxu0 0.0
  %288 = vmatpush1.msra.mxu0 %v243
  %289 = vmatprep.subr.mxu0 0.0
  %290 = vmatpush1.msra.mxu0 %v242
  %291 = vmatprep.subr.mxu0 0.0
  %292 = vmatpush2.msra.mxu0 0.0
  %293 = vmatprep.subr.mxu0 0.0
  %294 = vmatpush2.msra.mxu0 0.0
  %295 = vmatprep.subr.mxu0 0.0
  %296 = vmatpush2.msra.mxu0 0.0
  %297 = vmatprep.subr.mxu0 0.0
  %298 = vmatpush2.msra.mxu0 0.0
  %299 = vmatprep.subr.mxu0 0.0
  %300 = vmatpush2.msra.mxu0 0.0
  %301 = vmatprep.subr.mxu0 0.0
  %302 = vmatpush2.msra.mxu0 0.0
  %303 = vmatprep.subr.mxu0 0.0
  %304 = vmatpush2.msra.mxu0 0.0
  %305 = vmatprep.subr.mxu0 0.0
  %306 = vmatpush2.msra.mxu0 0.0
  %307 = vmatprep.subr.mxu0 0.0
  %308 = vmatpush2.msra.mxu0 0.0
  %309 = vmatprep.subr.mxu0 0.0
  %310 = vmatpush2.msra.mxu0 0.0
  %311 = vmatprep.subr.mxu0 0.0
  %312 = vmatpush2.msra.mxu0 0.0
  %313 = vmatprep.subr.mxu0 0.0
  %314 = vmatpush2.msra.mxu0 0.0
  %315 = vmatprep.subr.mxu0 0.0
  %316 = vmatpush2.msra.mxu0 0.0
  %317 = vmatprep.subr.mxu0 0.0
  %318 = vmatpush2.msra.mxu0 0.0
  %319 = vmatprep.subr.mxu0 0.0
  %320 = vmatpush2.msra.mxu0 0.0
  %321 = vmatprep.subr.mxu0 0.0
  %322 = vmatpush2.msra.mxu0 0.0
  %323 = vmatprep.mubr.f32.mxu0 0.0
  %324 = vmatmul.mubr.f32.gmra.mxu0 %v257
  %v325 = vpop.f32.mrf.mxu0
  %v326 = vadd.f32 %v254, %v325
  %v327 = vpop.f32.mrf.mxu0
  %328 = vdwg.mxu0
  %v329 = vmax.f32 %v326, 0.0
  %v330 = vld [vmem:[%s3 + $0x8] sm:$0x1]
  %v331 = vld [vmem:[%s3 + $0x9] sm:$0x1]
  %vm332 = vcmask 64512
  %v333 = vsel %vm332, %v329, 0.0
  %v334 = vrot.slane %v333, 4
  %v335 = vadd.f32 %v333, %v334
  %v336 = vrot.slane %v335, 2
  %v337 = vadd.f32 %v335, %v336
  %v338 = vrot.slane %v337, 1
  %v339 = vadd.f32 %v337, %v338
  %v340 = vmul.f32 %v339, %v28
  %v341 = vmul.f32 %v329, %v329
  %v342 = vsel %vm332, %v341, 0.0
  %v343 = vrot.slane %v342, 4
  %v344 = vadd.f32 %v342, %v343
  %v345 = vrot.slane %v344, 2
  %v346 = vadd.f32 %v344, %v345
  %v347 = vrot.slane %v346, 1
  %v348 = vadd.f32 %v346, %v347
  %v349 = vmul.f32 %v348, %v28
  %v350 = vmul.f32 %v340, %v340
  %v351 = vsub.f32 %v349, %v350
  %v352 = vadd.f32 %v351, 1e-05
  %v353 = vrsqrt.pop %v352
  %v354 = vmul.f32 %v330, %v353
  %v355 = vlaneseq
  %v356 = vshrl.u32 %v355, 7
  %v357 = vsub.s32 0, %v356
  %v358 = vrot.slane %v354, %v357
  %v359 = vmul.f32 %v329, %v358
  %v360 = vmul.f32 %v340, %v354
  %v361 = vsub.f32 %v331, %v360
  %v362 = vlaneseq
  %v363 = vshrl.u32 %v362, 7
  %v364 = vsub.s32 0, %v363
  %v365 = vrot.slane %v361, %v364
  %v366 = vadd.f32 %v359, %v365
  %v367 = vld [vmem:[%s2 + $0xc0] sm:$0xff]
  %v368 = vld [vmem:[%s3 + $0x3] sm:$0x1]
  %v369 = vlaneseq
  %v370 = vshrl.u32 %v369, 7
  %v371 = vsub.s32 0, %v370
  %v372 = vrot.slane %v368, %v371
  %v374 = vsel %vm332, %v366, 0
  %376 = vmatprep.subr.mxu0 0.0
  %377 = vmatpush1.msra.mxu0 0.0
  %378 = vmatprep.subr.mxu0 0.0
  %379 = vmatpush1.msra.mxu0 0.0
  %380 = vmatprep.subr.mxu0 0.0
  %381 = vmatpush1.msra.mxu0 0.0
  %382 = vmatprep.subr.mxu0 0.0
  %383 = vmatpush1.msra.mxu0 0.0
  %384 = vmatprep.subr.mxu0 0.0
  %385 = vmatpush1.msra.mxu0 0.0
  %386 = vmatprep.subr.mxu0 0.0
  %387 = vmatpush1.msra.mxu0 0.0
  %388 = vmatprep.subr.mxu0 0.0
  %389 = vmatpush1.msra.mxu0 0.0
  %390 = vmatprep.subr.mxu0 0.0
  %391 = vmatpush1.msra.mxu0 0.0
  %392 = vmatprep.subr.mxu0 0.0
  %393 = vmatpush1.msra.mxu0 0.0
  %394 = vmatprep.subr.mxu0 0.0
  %395 = vmatpush1.msra.mxu0 0.0
  %396 = vmatprep.subr.mxu0 0.0
  %397 = vmatpush1.msra.mxu0 0.0
  %398 = vmatprep.subr.mxu0 0.0
  %399 = vmatpush1.msra.mxu0 0.0
  %400 = vmatprep.subr.mxu0 0.0
  %401 = vmatpush1.msra.mxu0 0.0
  %402 = vmatprep.subr.mxu0 0.0
  %403 = vmatpush1.msra.mxu0 0.0
  %404 = vmatprep.subr.mxu0 0.0
  %405 = vmatpush1.msra.mxu0 0.0
  %406 = vmatprep.subr.mxu0 0.0
  %407 = vmatpush1.msra.mxu0 %v367
  %408 = vmatprep.subr.mxu0 0.0
  %409 = vmatpush2.msra.mxu0 0.0
  %410 = vmatprep.subr.mxu0 0.0
  %411 = vmatpush2.msra.mxu0 0.0
  %412 = vmatprep.subr.mxu0 0.0
  %413 = vmatpush2.msra.mxu0 0.0
  %414 = vmatprep.subr.mxu0 0.0
  %415 = vmatpush2.msra.mxu0 0.0
  %416 = vmatprep.subr.mxu0 0.0
  %417 = vmatpush2.msra.mxu0 0.0
  %418 = vmatprep.subr.mxu0 0.0
  %419 = vmatpush2.msra.mxu0 0.0
  %420 = vmatprep.subr.mxu0 0.0
  %421 = vmatpush2.msra.mxu0 0.0
  %422 = vmatprep.subr.mxu0 0.0
  %423 = vmatpush2.msra.mxu0 0.0
  %424 = vmatprep.subr.mxu0 0.0
  %425 = vmatpush2.msra.mxu0 0.0
  %426 = vmatprep.subr.mxu0 0.0
  %427 = vmatpush2.msra.mxu0 0.0
  %428 = vmatprep.subr.mxu0 0.0
  %429 = vmatpush2.msra.mxu0 0.0
  %430 = vmatprep.subr.mxu0 0.0
  %431 = vmatpush2.msra.mxu0 0.0
  %432 = vmatprep.subr.mxu0 0.0
  %433 = vmatpush2.msra.mxu0 0.0
  %434 = vmatprep.subr.mxu0 0.0
  %435 = vmatpush2.msra.mxu0 0.0
  %436 = vmatprep.subr.mxu0 0.0
  %437 = vmatpush2.msra.mxu0 0.0
  %438 = vmatprep.subr.mxu0 0.0
  %439 = vmatpush2.msra.mxu0 0.0
  %440 = vmatprep.mubr.f32.mxu0 0.0
  %441 = vmatmul.mubr.f32.gmra.mxu0 %v374
  %v442 = vpop.f32.mrf.mxu0
  %v443 = vadd.f32 %v372, %v442
  %v444 = vpop.f32.mrf.mxu0
  %445 = vdwg.mxu0
  %v446 = vmax.f32 %v443, 0.0
  %v447 = vld [vmem:[%s2 + $0xc8] sm:$0xff]
  %v448 = vld [vmem:[%s2 + $0xd0] sm:$0xff]
  %v449 = vld [vmem:[%s2 + $0xd8] sm:$0xff]
  %v450 = vld [vmem:[%s2 + $0xe0] sm:$0xff]
  %v451 = vld [vmem:[%s3 + $0x4] sm:$0x1]
  %v452 = vlaneseq
  %v453 = vshrl.u32 %v452, 7
  %v454 = vsub.s32 0, %v453
  %v455 = vrot.slane %v451, %v454
  %vm456 = vcmask 261120
  %v458 = vsel %vm456, %v446, 0
  %460 = vmatprep.subr.mxu0 0.0
  %461 = vmatpush1.msra.mxu0 0.0
  %462 = vmatprep.subr.mxu0 0.0
  %463 = vmatpush1.msra.mxu0 0.0
  %464 = vmatprep.subr.mxu0 0.0
  %465 = vmatpush1.msra.mxu0 0.0
  %466 = vmatprep.subr.mxu0 0.0
  %467 = vmatpush1.msra.mxu0 0.0
  %468 = vmatprep.subr.mxu0 0.0
  %469 = vmatpush1.msra.mxu0 0.0
  %470 = vmatprep.subr.mxu0 0.0
  %471 = vmatpush1.msra.mxu0 0.0
  %472 = vmatprep.subr.mxu0 0.0
  %473 = vmatpush1.msra.mxu0 0.0
  %474 = vmatprep.subr.mxu0 0.0
  %475 = vmatpush1.msra.mxu0 0.0
  %476 = vmatprep.subr.mxu0 0.0
  %477 = vmatpush1.msra.mxu0 0.0
  %478 = vmatprep.subr.mxu0 0.0
  %479 = vmatpush1.msra.mxu0 0.0
  %480 = vmatprep.subr.mxu0 0.0
  %481 = vmatpush1.msra.mxu0 0.0
  %482 = vmatprep.subr.mxu0 0.0
  %483 = vmatpush1.msra.mxu0 0.0
  %484 = vmatprep.subr.mxu0 0.0
  %485 = vmatpush1.msra.mxu0 %v450
  %486 = vmatprep.subr.mxu0 0.0
  %487 = vmatpush1.msra.mxu0 %v449
  %488 = vmatprep.subr.mxu0 0.0
  %489 = vmatpush1.msra.mxu0 %v448
  %490 = vmatprep.subr.mxu0 0.0
  %491 = vmatpush1.msra.mxu0 %v447
  %492 = vmatprep.subr.mxu0 0.0
  %493 = vmatpush2.msra.mxu0 0.0
  %494 = vmatprep.subr.mxu0 0.0
  %495 = vmatpush2.msra.mxu0 0.0
  %496 = vmatprep.subr.mxu0 0.0
  %497 = vmatpush2.msra.mxu0 0.0
  %498 = vmatprep.subr.mxu0 0.0
  %499 = vmatpush2.msra.mxu0 0.0
  %500 = vmatprep.subr.mxu0 0.0
  %501 = vmatpush2.msra.mxu0 0.0
  %502 = vmatprep.subr.mxu0 0.0
  %503 = vmatpush2.msra.mxu0 0.0
  %504 = vmatprep.subr.mxu0 0.0
  %505 = vmatpush2.msra.mxu0 0.0
  %506 = vmatprep.subr.mxu0 0.0
  %507 = vmatpush2.msra.mxu0 0.0
  %508 = vmatprep.subr.mxu0 0.0
  %509 = vmatpush2.msra.mxu0 0.0
  %510 = vmatprep.subr.mxu0 0.0
  %511 = vmatpush2.msra.mxu0 0.0
  %512 = vmatprep.subr.mxu0 0.0
  %513 = vmatpush2.msra.mxu0 0.0
  %514 = vmatprep.subr.mxu0 0.0
  %515 = vmatpush2.msra.mxu0 0.0
  %516 = vmatprep.subr.mxu0 0.0
  %517 = vmatpush2.msra.mxu0 0.0
  %518 = vmatprep.subr.mxu0 0.0
  %519 = vmatpush2.msra.mxu0 0.0
  %520 = vmatprep.subr.mxu0 0.0
  %521 = vmatpush2.msra.mxu0 0.0
  %522 = vmatprep.subr.mxu0 0.0
  %523 = vmatpush2.msra.mxu0 0.0
  %524 = vmatprep.mubr.f32.mxu0 0.0
  %525 = vmatmul.mubr.f32.gmra.mxu0 %v458
  %v526 = vpop.f32.mrf.mxu0
  %v527 = vadd.f32 %v455, %v526
  %v528 = vpop.f32.mrf.mxu0
  %529 = vdwg.mxu0
  %v530 = vmax.f32 %v527, 0.0
  %v531 = vld [vmem:[%s2 + $0xe8] sm:$0xff]
  %v532 = vld [vmem:[%s3 + $0x5] sm:$0x1]
  %v533 = vlaneseq
  %v534 = vshrl.u32 %v533, 7
  %v535 = vsub.s32 0, %v534
  %v536 = vrot.slane %v532, %v535
  %v538 = vsel %vm332, %v530, 0
  %540 = vmatprep.subr.mxu0 0.0
  %541 = vmatpush1.msra.mxu0 0.0
  %542 = vmatprep.subr.mxu0 0.0
  %543 = vmatpush1.msra.mxu0 0.0
  %544 = vmatprep.subr.mxu0 0.0
  %545 = vmatpush1.msra.mxu0 0.0
  %546 = vmatprep.subr.mxu0 0.0
  %547 = vmatpush1.msra.mxu0 0.0
  %548 = vmatprep.subr.mxu0 0.0
  %549 = vmatpush1.msra.mxu0 0.0
  %550 = vmatprep.subr.mxu0 0.0
  %551 = vmatpush1.msra.mxu0 0.0
  %552 = vmatprep.subr.mxu0 0.0
  %553 = vmatpush1.msra.mxu0 0.0
  %554 = vmatprep.subr.mxu0 0.0
  %555 = vmatpush1.msra.mxu0 0.0
  %556 = vmatprep.subr.mxu0 0.0
  %557 = vmatpush1.msra.mxu0 0.0
  %558 = vmatprep.subr.mxu0 0.0
  %559 = vmatpush1.msra.mxu0 0.0
  %560 = vmatprep.subr.mxu0 0.0
  %561 = vmatpush1.msra.mxu0 0.0
  %562 = vmatprep.subr.mxu0 0.0
  %563 = vmatpush1.msra.mxu0 0.0
  %564 = vmatprep.subr.mxu0 0.0
  %565 = vmatpush1.msra.mxu0 0.0
  %566 = vmatprep.subr.mxu0 0.0
  %567 = vmatpush1.msra.mxu0 0.0
  %568 = vmatprep.subr.mxu0 0.0
  %569 = vmatpush1.msra.mxu0 0.0
  %570 = vmatprep.subr.mxu0 0.0
  %571 = vmatpush1.msra.mxu0 %v531
  %572 = vmatprep.subr.mxu0 0.0
  %573 = vmatpush2.msra.mxu0 0.0
  %574 = vmatprep.subr.mxu0 0.0
  %575 = vmatpush2.msra.mxu0 0.0
  %576 = vmatprep.subr.mxu0 0.0
  %577 = vmatpush2.msra.mxu0 0.0
  %578 = vmatprep.subr.mxu0 0.0
  %579 = vmatpush2.msra.mxu0 0.0
  %580 = vmatprep.subr.mxu0 0.0
  %581 = vmatpush2.msra.mxu0 0.0
  %582 = vmatprep.subr.mxu0 0.0
  %583 = vmatpush2.msra.mxu0 0.0
  %584 = vmatprep.subr.mxu0 0.0
  %585 = vmatpush2.msra.mxu0 0.0
  %586 = vmatprep.subr.mxu0 0.0
  %587 = vmatpush2.msra.mxu0 0.0
  %588 = vmatprep.subr.mxu0 0.0
  %589 = vmatpush2.msra.mxu0 0.0
  %590 = vmatprep.subr.mxu0 0.0
  %591 = vmatpush2.msra.mxu0 0.0
  %592 = vmatprep.subr.mxu0 0.0
  %593 = vmatpush2.msra.mxu0 0.0
  %594 = vmatprep.subr.mxu0 0.0
  %595 = vmatpush2.msra.mxu0 0.0
  %596 = vmatprep.subr.mxu0 0.0
  %597 = vmatpush2.msra.mxu0 0.0
  %598 = vmatprep.subr.mxu0 0.0
  %599 = vmatpush2.msra.mxu0 0.0
  %600 = vmatprep.subr.mxu0 0.0
  %601 = vmatpush2.msra.mxu0 0.0
  %602 = vmatprep.subr.mxu0 0.0
  %603 = vmatpush2.msra.mxu0 0.0
  %604 = vmatprep.mubr.f32.mxu0 0.0
  %605 = vmatmul.mubr.f32.gmra.mxu0 %v538
  %v606 = vpop.f32.mrf.mxu0
  %v607 = vadd.f32 %v536, %v606
  %v608 = vpop.f32.mrf.mxu0
  %609 = vdwg.mxu0
  %vm610 = vcmask 7168
  %611 = vst.msk [vmem:[%s4] sm:$0xff] %vm610, %v607
  // Predicated region
  $region18: #{tpu_custom_call.1} parent=0 // pred_check
    _
  $region19: #{tpu_custom_call.1} parent=0 // pred_check_branch
    %613 = sbr.rel (0) target = $region21
  $region20: #{tpu_custom_call.1} parent=0 // pred_region
    _
  $region21: #{tpu_custom_call.1} parent=0 // pred_fallthru
    _
  // Predicated region
  $region22: #{tpu_custom_call.1} parent=0 // pred_check
    _
  $region23: #{tpu_custom_call.1} parent=0 // pred_check_branch
    %615 = sbr.rel (0) target = $region25
  $region24: #{tpu_custom_call.1} parent=0 // pred_region
    _
  $region25: #{tpu_custom_call.1} parent=0 // pred_fallthru
    _

</llo_original>
